<compile_context>
chip_gen: v5e
topology: v5e:2x2
jax: 0.10.0
libtpu: 0.0.40
codegen_flags: <defaults>
</compile_context>

<pallas_src>
import functools

import jax
import jax.numpy as jnp
from jax.experimental import pallas as pl
from jax.experimental.pallas import tpu as pltpu


def _leaky_relu(y, slope):
    if 0.0 <= slope <= 1.0:
        return jnp.maximum(y, y * slope)          # cheaper than compare+select
    return jnp.where(y >= 0, y, y * slope)


# --------------------------------------------------------------------------
# Kernels
# --------------------------------------------------------------------------
def _abn_slab_kernel(x_ref, w_ref, b_ref, o_ref, *, eps, slope, inv_count):
    """Single-pass path: the whole (N, c_blk, HW) slab is resident in VMEM."""
    x = x_ref[...].astype(jnp.float32)                       # (N, c_blk, HW)
    # Per-channel mean (sublane reduce over N, lane reduce over HW).
    mean = jnp.sum(jnp.sum(x, axis=0), axis=1, keepdims=True) * inv_count
    centered = x - mean[None]                                # (N, c_blk, HW)
    # Variance around the mean (avoids E[x^2]-mean^2 cancellation).
    var = jnp.sum(jnp.sum(centered * centered, axis=0), axis=1,
                  keepdims=True) * inv_count                 # (c_blk, 1)
    scale = w_ref[...] * jax.lax.rsqrt(var + eps)            # (c_blk, 1)
    y = centered * scale[None] + b_ref[...][None]            # single FMA / elem
    o_ref[...] = _leaky_relu(y, slope).astype(o_ref.dtype)


def _abn_tiled_kernel(x_ref, w_ref, b_ref, o_ref,
                      sum_ref, sq_ref, scale_ref, shift_ref,
                      *, eps, slope, inv_count):
    """Two-phase fallback: phase 0 = stats, phase 1 = normalize + activate."""
    phase = pl.program_id(1)
    n = pl.program_id(2)
    j = pl.program_id(3)
    n_n = pl.num_programs(2)
    n_hw = pl.num_programs(3)

    @pl.when(phase == 0)
    def _stats_phase():
        @pl.when((n == 0) & (j == 0))
        def _init():
            sum_ref[...] = jnp.zeros_like(sum_ref)
            sq_ref[...] = jnp.zeros_like(sq_ref)

        x = x_ref[...].astype(jnp.float32)                   # (n_blk, c_blk, hw_blk)
        xs = jnp.sum(x, axis=0)                              # (c_blk, hw_blk)
        x2 = jnp.sum(x * x, axis=0)
        sum_ref[...] += jnp.sum(xs, axis=1, keepdims=True)   # lane reduce (XLU)
        sq_ref[...] += jnp.sum(x2, axis=1, keepdims=True)

        @pl.when((n == n_n - 1) & (j == n_hw - 1))
        def _finalize():
            mean = sum_ref[...] * inv_count
            # Guard against small negative values from f32 cancellation.
            var = jnp.maximum(sq_ref[...] * inv_count - mean * mean, 0.0)
            inv_std = jax.lax.rsqrt(var + eps)
            scale = w_ref[...] * inv_std                     # fold affine
            scale_ref[...] = scale
            shift_ref[...] = b_ref[...] - mean * scale

    @pl.when(phase == 1)
    def _normalize_phase():
        x = x_ref[...].astype(jnp.float32)
        y = x * scale_ref[...][None] + shift_ref[...][None]  # single FMA / elem
        o_ref[...] = _leaky_relu(y, slope).astype(o_ref.dtype)


# --------------------------------------------------------------------------
# Tiling heuristics
# --------------------------------------------------------------------------
def _vmem_capacity_bytes():
    try:
        info = pltpu.get_tpu_info()
        cap = getattr(info, "vmem_capacity_bytes", None)
        if cap:
            return int(cap)
    except Exception:
        pass
    return 64 * 1024 * 1024  # conservative default (v7x per-TensorCore)


def _divisor_blocks(total, multiple, cap):
    """Divisors of `total` that are multiples of `multiple`, descending, <= cap."""
    out = []
    d = min(total, cap)
    d -= d % multiple
    while d >= multiple:
        if total % d == 0:
            out.append(d)
        d -= multiple
    return out


def _pick_c_block_slab(C, N, HW, sublane_multiple, slab_budget_bytes):
    """Channel block for the single-pass path, or None if no slab fits."""
    per_c = N * HW * 4  # f32 working bytes per channel
    cands = _divisor_blocks(C, sublane_multiple, C)
    if not cands:
        # C not divisible by the sublane packing: full-C block is still legal.
        return C if C * per_c <= slab_budget_bytes else None
    feasible = [c for c in cands if c * per_c <= slab_budget_bytes]
    if not feasible:
        return None
    multi = [c for c in feasible if C // c >= 2]              # megacore: >= 2 blocks
    even = [c for c in multi if (C // c) % 2 == 0]            # balanced across 2 TCs
    return (even or multi or feasible)[0]


def _pick_tiled_blocks(N, C, HW, itemsize, sublane_multiple, tile_budget_bytes):
    """(n_blk, c_blk, hw_blk) for the two-phase fallback path."""
    work = max(itemsize, 4)  # budget against the f32 working size
    cands = _divisor_blocks(C, sublane_multiple, 32)
    if cands:
        multi = [c for c in cands if C // c >= 2]
        preferred = (multi or cands)[0]
        c_order = [preferred] + [c for c in cands if c < preferred]
    else:
        c_order = [C]
    # Prefer wide, lane-dense HW tiles (multiples of 128 dividing HW);
    # fall back to full HW when no such divisor exists (e.g. 56*56).
    hw_cands = [d for d in range(128 * (HW // 128), 0, -128) if HW % d == 0] or [HW]
    n_divs = [d for d in range(N, 0, -1) if N % d == 0]
    for c_blk in c_order:
        for hw_blk in hw_cands:
            for n_blk in n_divs:
                if n_blk * c_blk * hw_blk * work <= tile_budget_bytes:
                    return n_blk, c_blk, hw_blk
    # Pathological shapes: smallest legal tile (may exceed budget).
    return 1, c_order[-1], hw_cands[-1]


# --------------------------------------------------------------------------
# Wrapper
# --------------------------------------------------------------------------
def abn_forward(x_nchw, weight, bias, *, eps=1e-5, slope=0.01,
                slab_budget_bytes=None, tile_budget_bytes=None,
                vmem_limit_bytes=None):
    """ABN forward (training-mode batch norm + leaky_relu) via Pallas."""
    N, C, H, W = x_nchw.shape
    HW = H * W

    # Free view: merge contiguous trailing dims; no transpose / extra HBM pass.
    x = x_nchw.reshape(N, C, HW)

    itemsize = jnp.dtype(x.dtype).itemsize
    sublane_multiple = {4: 8, 2: 16, 1: 32}.get(itemsize, 8)

    # Per-generation sizing: 128 MiB VMEM (v5e/v6e) vs 64 MiB (v7x).
    vmem_cap = _vmem_capacity_bytes()
    if vmem_limit_bytes is None:
        vmem_limit_bytes = int(min(96 << 20, (vmem_cap * 3) // 4))
    if slab_budget_bytes is None:
        slab_budget_bytes = int(min(12 << 20, vmem_cap // 10))
    if tile_budget_bytes is None:
        tile_budget_bytes = int(min(8 << 20, vmem_cap // 16))

    w = weight.reshape(C, 1).astype(jnp.float32)
    b = bias.reshape(C, 1).astype(jnp.float32)
    inv_count = 1.0 / float(N * HW)

    # ---------------- Fast path: resident slab, 1 read + 1 write of x ------
    c_blk = _pick_c_block_slab(C, N, HW, sublane_multiple, slab_budget_bytes)
    if c_blk is not None:
        kernel = functools.partial(_abn_slab_kernel, eps=float(eps),
                                   slope=float(slope), inv_count=inv_count)
        out = pl.pallas_call(
            kernel,
            out_shape=jax.ShapeDtypeStruct((N, C, HW), x.dtype),
            grid=(C // c_blk,),
            in_specs=[
                pl.BlockSpec((N, c_blk, HW), lambda i: (0, i, 0)),
                pl.BlockSpec((c_blk, 1), lambda i: (i, 0)),
                pl.BlockSpec((c_blk, 1), lambda i: (i, 0)),
            ],
            out_specs=pl.BlockSpec((N, c_blk, HW), lambda i: (0, i, 0)),
            compiler_params=pltpu.CompilerParams(
                dimension_semantics=("parallel",),
                vmem_limit_bytes=vmem_limit_bytes,
            ),
        )(x, w, b)
        return out.reshape(N, C, H, W)

    # ---------------- Fallback: two-phase tiled streaming -------------------
    n_blk, cb, hw_blk = _pick_tiled_blocks(N, C, HW, itemsize,
                                           sublane_multiple, tile_budget_bytes)
    kernel = functools.partial(_abn_tiled_kernel, eps=float(eps),
                               slope=float(slope), inv_count=inv_count)
    grid = (C // cb, 2, N // n_blk, HW // hw_blk)

    out = pl.pallas_call(
        kernel,
        out_shape=jax.ShapeDtypeStruct((N, C, HW), x.dtype),
        grid=grid,
        in_specs=[
            # x: same tiles read in both phases (2 reads total).
            pl.BlockSpec((n_blk, cb, hw_blk), lambda i, p, n, j: (n, i, j)),
            # weight / bias: channel-only index_map -> resident in VMEM.
            pl.BlockSpec((cb, 1), lambda i, p, n, j: (i, 0)),
            pl.BlockSpec((cb, 1), lambda i, p, n, j: (i, 0)),
        ],
        # Phase 0 holds a constant output block index (no garbage writeback);
        # phase 1 walks (n, j) and writes each output block exactly once.
        out_specs=pl.BlockSpec((n_blk, cb, hw_blk),
                               lambda i, p, n, j: (n * p, i, j * p)),
        scratch_shapes=[
            pltpu.VMEM((cb, 1), jnp.float32),  # sum accumulator
            pltpu.VMEM((cb, 1), jnp.float32),  # sum-of-squares accumulator
            pltpu.VMEM((cb, 1), jnp.float32),  # folded scale
            pltpu.VMEM((cb, 1), jnp.float32),  # folded shift
        ],
        compiler_params=pltpu.CompilerParams(
            dimension_semantics=("parallel", "arbitrary", "arbitrary", "arbitrary"),
            vmem_limit_bytes=vmem_limit_bytes,
        ),
    )(x, w, b)
    return out.reshape(N, C, H, W)


# --------------------------------------------------------------------------
# Reference + self-test
# --------------------------------------------------------------------------
def _abn_reference(x_nchw, weight, bias, *, eps=1e-5, slope=0.01):
    mean = jnp.mean(x_nchw, axis=(0, 2, 3), keepdims=True)
    var = jnp.mean((x_nchw - mean) ** 2, axis=(0, 2, 3), keepdims=True)
    y = (x_nchw - mean) * jax.lax.rsqrt(var + eps)
    y = y * weight.reshape(1, -1, 1, 1) + bias.reshape(1, -1, 1, 1)
    return jnp.where(y >= 0, y, slope * y)


if __name__ == "__main__":
    key = jax.random.PRNGKey(0)

    def _check(shape, tag, **kw):
        N, C, H, W = shape
        kx, kw_, kb = jax.random.split(jax.random.fold_in(key, N * C * H * W), 3)
        # Non-zero mean stresses the centered-variance computation.
        x = jax.random.normal(kx, shape, dtype=jnp.float32) * 1.5 + 3.0
        weight = 1.0 + 0.1 * jax.random.normal(kw_, (C,), dtype=jnp.float32)
        bias = 0.1 * jax.random.normal(kb, (C,), dtype=jnp.float32)

        out = abn_forward(x, weight, bias, eps=1e-5, slope=0.01, **kw)
        out = jax.block_until_ready(out)
        ref = _abn_reference(x, weight, bias, eps=1e-5, slope=0.01)
        assert out.shape == shape, f"{tag}: bad shape"
        assert jnp.allclose(out, ref, atol=1e-4, rtol=1e-4), f"{tag}: mismatch"

    # Primary small shape (single-pass resident-slab path).
    _check((2, 4, 16, 16), "slab")
    # Single-pass path with >= 2 channel blocks (megacore-friendly split).
    _check((2, 16, 8, 8), "slab-multiblock")
    # Force the tiled two-phase fallback (tiny budgets) to exercise N/HW tiling.
    _check((2, 8, 32, 32), "tiled", slab_budget_bytes=1,
           tile_budget_bytes=16 * 1024)

    print("KERNEL_OK")
</pallas_src>

<mosaic_0001>
module attributes {stable_mosaic.version = 11 : i64} {
  func.func @_abn_slab_kernel(%arg0: i32, %arg1: memref<2x4x256xf32, #tpu.memory_space<vmem>>, %arg2: memref<4x1xf32, #tpu.memory_space<vmem>>, %arg3: memref<4x1xf32, #tpu.memory_space<vmem>>, %arg4: memref<2x4x256xf32, #tpu.memory_space<vmem>>) attributes {dimension_semantics = [#tpu.dimension_semantics<parallel>], iteration_bounds = array<i64: 1>, scalar_prefetch = 0 : i64, scratch_operands = 0 : i64, tpu.core_type = #tpu.core_type<tc>, window_params = [{transform_indices = @transform_0, window_bounds = array<i64: 2, 4, 256>}, {transform_indices = @transform_1, window_bounds = array<i64: 4, 1>}, {transform_indices = @transform_2, window_bounds = array<i64: 4, 1>}, {transform_indices = @transform_3, window_bounds = array<i64: 2, 4, 256>}]} {
    %c0 = arith.constant 0 : index
    %c0_0 = arith.constant 0 : index
    %c0_1 = arith.constant 0 : index
    %0 = vector.load %arg1[%c0, %c0_0, %c0_1] : memref<2x4x256xf32, #tpu.memory_space<vmem>>, vector<2x4x256xf32>
    %cst = arith.constant dense<0.000000e+00> : vector<4x256xf32>
    %1 = vector.multi_reduction <add>, %0, %cst [0] : vector<2x4x256xf32> to vector<4x256xf32>
    %cst_2 = arith.constant dense<0.000000e+00> : vector<4xf32>
    %2 = vector.multi_reduction <add>, %1, %cst_2 [1] : vector<4x256xf32> to vector<4xf32>
    %3 = vector.shape_cast %2 : vector<4xf32> to vector<4x1xf32>
    %cst_3 = arith.constant 0.001953125 : f32
    %4 = vector.broadcast %cst_3 : f32 to vector<4x1xf32>
    %5 = arith.mulf %3, %4 : vector<4x1xf32>
    %6 = vector.shape_cast %5 : vector<4x1xf32> to vector<1x4x1xf32>
    %7 = vector.broadcast %6 : vector<1x4x1xf32> to vector<2x4x256xf32>
    %8 = arith.subf %0, %7 : vector<2x4x256xf32>
    %9 = arith.mulf %8, %8 : vector<2x4x256xf32>
    %cst_4 = arith.constant dense<0.000000e+00> : vector<4x256xf32>
    %10 = vector.multi_reduction <add>, %9, %cst_4 [0] : vector<2x4x256xf32> to vector<4x256xf32>
    %cst_5 = arith.constant dense<0.000000e+00> : vector<4xf32>
    %11 = vector.multi_reduction <add>, %10, %cst_5 [1] : vector<4x256xf32> to vector<4xf32>
    %12 = vector.shape_cast %11 : vector<4xf32> to vector<4x1xf32>
    %cst_6 = arith.constant 0.001953125 : f32
    %13 = vector.broadcast %cst_6 : f32 to vector<4x1xf32>
    %14 = arith.mulf %12, %13 : vector<4x1xf32>
    %c0_7 = arith.constant 0 : index
    %c0_8 = arith.constant 0 : index
    %15 = vector.load %arg2[%c0_7, %c0_8] : memref<4x1xf32, #tpu.memory_space<vmem>>, vector<4x1xf32>
    %cst_9 = arith.constant 9.99999974E-6 : f32
    %16 = vector.broadcast %cst_9 : f32 to vector<4x1xf32>
    %17 = arith.addf %14, %16 : vector<4x1xf32>
    %18 = math.rsqrt %17 : vector<4x1xf32>
    %19 = arith.mulf %15, %18 : vector<4x1xf32>
    %20 = vector.shape_cast %19 : vector<4x1xf32> to vector<1x4x1xf32>
    %21 = vector.broadcast %20 : vector<1x4x1xf32> to vector<2x4x256xf32>
    %22 = arith.mulf %8, %21 : vector<2x4x256xf32>
    %c0_10 = arith.constant 0 : index
    %c0_11 = arith.constant 0 : index
    %23 = vector.load %arg3[%c0_10, %c0_11] : memref<4x1xf32, #tpu.memory_space<vmem>>, vector<4x1xf32>
    %24 = vector.shape_cast %23 : vector<4x1xf32> to vector<1x4x1xf32>
    %25 = vector.broadcast %24 : vector<1x4x1xf32> to vector<2x4x256xf32>
    %26 = arith.addf %22, %25 : vector<2x4x256xf32>
    %cst_12 = arith.constant 0.00999999977 : f32
    %27 = vector.broadcast %cst_12 : f32 to vector<2x4x256xf32>
    %28 = arith.mulf %26, %27 : vector<2x4x256xf32>
    %29 = arith.maximumf %26, %28 : vector<2x4x256xf32>
    %c0_13 = arith.constant 0 : index
    %c0_14 = arith.constant 0 : index
    %c0_15 = arith.constant 0 : index
    %30 = vector.load %arg4[%c0_13, %c0_14, %c0_15] : memref<2x4x256xf32, #tpu.memory_space<vmem>>, vector<2x4x256xf32>
    tpu.vector_store %arg4[%c0_13, %c0_14, %c0_15], %29 {strides = array<i32>} : memref<2x4x256xf32, #tpu.memory_space<vmem>>, vector<2x4x256xf32>,
    return
  }
  func.func @transform_0(%arg0: i32) -> (i32, i32, i32) {
    %c0_i32 = arith.constant 0 : i32
    %c0_i32_0 = arith.constant 0 : i32
    %c0_i32_1 = arith.constant 0 : i32
    return %c0_i32, %arg0, %c0_i32_0 : i32, i32, i32
  }
  func.func @transform_1(%arg0: i32) -> (i32, i32) {
    %c0_i32 = arith.constant 0 : i32
    %c0_i32_0 = arith.constant 0 : i32
    return %arg0, %c0_i32 : i32, i32
  }
  func.func @transform_2(%arg0: i32) -> (i32, i32) {
    %c0_i32 = arith.constant 0 : i32
    %c0_i32_0 = arith.constant 0 : i32
    return %arg0, %c0_i32 : i32, i32
  }
  func.func @transform_3(%arg0: i32) -> (i32, i32, i32) {
    %c0_i32 = arith.constant 0 : i32
    %c0_i32_0 = arith.constant 0 : i32
    %c0_i32_1 = arith.constant 0 : i32
    return %c0_i32, %arg0, %c0_i32_0 : i32, i32, i32
  }
}

</mosaic_0001>

<llo_original>
// kernel: tpu_custom_call.1
$region0: #{tpu_custom_call.1}
  #allocation0 [shape = 'u32[]', space=smem, size = 0x4, offset = 0x4, fixed_abs, tag = 'smem constant byte address 0x4 - core index']
  #allocation1 [shape = 'u32[72,128]{1,0:T(1,128)}', space=vmem, size = 0x9000, scoped, tag = 'internal scratch']
  %s0 = inlined_call_operand.hbm [shape: f32[2,4,256], index: 0, kind: input, shape index: {}]
  %s1 = inlined_call_operand.vmem [shape: f32[4,1], index: 1, kind: input, shape index: {}]
  %s2 = inlined_call_operand.vmem [shape: f32[4,1], index: 2, kind: input, shape index: {}]
  %s3 = inlined_call_operand.hbm [shape: f32[2,4,256], index: 3, kind: output, shape index: {}]
  %s4 = sld [smem:[#allocation0]]
  $region26: #{tpu_custom_call.1} parent=0
    _
  %s6 = ssub.s32 1, %s4
  %s7 = scalar_select 0, %s6, %s4
  $region1: #{tpu_custom_call.1} parent=0
    #allocation2 [shape = 'u8[8192]{0}', space=vmem, size = 0x2000, scoped, tag = 'input window, operand 0, single buffered']
    #allocation3 [shape = 's32[1]{0}', space=sflag, size = 0x4, scoped, tag = 'scoped memory for tpu_custom_call.1']
    #allocation4 [shape = 's32[1]{0}', space=sflag, size = 0x4, scoped, tag = 'scoped memory for tpu_custom_call.1']
    #allocation5 [shape = 'u8[8192]{0}', space=vmem, size = 0x2000, scoped, tag = 'output window, operand 0, single buffered']
    %8 = vsyncpa [#allocation3], 0
    %9 = vsyncpa [#allocation4], 0
    // Predicated region
    $region2: #{tpu_custom_call.1} parent=1 // pred_check
      _
    $region3: #{tpu_custom_call.1} parent=1 // pred_check_branch
      %11 = sbr.rel (0) target = $region5
    $region4: #{tpu_custom_call.1} parent=1 // pred_region
      %13 = vsyncadd [#allocation3], 0
      %s14 = sshll.u32 %s0, 4
      %s15 = int_to_ptr.hbm [resolvable:$true] %s14
      %s16 = sshll.u32 [#allocation2], 4
      %s17 = int_to_ptr.vmem [resolvable:$true] %s16
      %22 = dma.hbm_to_vmem [thread:$0]  %s15, 256, %s17, [#allocation3], 128, 128, 8
    $region5: #{tpu_custom_call.1} parent=1 // pred_fallthru
      _
    // Predicated region
    $region6: #{tpu_custom_call.1} parent=1 // pred_check
      _
    $region7: #{tpu_custom_call.1} parent=1 // pred_check_branch
      %24 = sbr.rel (0) target = $region9
    $region8: #{tpu_custom_call.1} parent=1 // pred_region
      _
    $region9: #{tpu_custom_call.1} parent=1 // pred_fallthru
      _
    // Predicated region
    $region10: #{tpu_custom_call.1} parent=1 // pred_check
      _
    $region11: #{tpu_custom_call.1} parent=1 // pred_check_branch
      %26 = sbr.rel (0) target = $region13
    $region12: #{tpu_custom_call.1} parent=1 // pred_region
      _
    $region13: #{tpu_custom_call.1} parent=1 // pred_fallthru
      _
    // Predicated region
    $region14: #{tpu_custom_call.1} parent=1 // pred_check
      _
    $region15: #{tpu_custom_call.1} parent=1 // pred_check_branch
      %28 = sbr.rel (0) target = $region17
    $region16: #{tpu_custom_call.1} parent=1 // pred_region
      %30 = dma.done [#allocation3], 256
    $region17: #{tpu_custom_call.1} parent=1 // pred_fallthru
      _
    %v31 = vld [vmem:[#allocation2] sm:$0xff]
    %v32 = vld [vmem:[#allocation2 + $0x8] sm:$0xff]
    %35 = vst [vmem:[#allocation1] ss:$2 sm:$0xff] %v31
    %v36 = vld.sshfl [vmem:[#allocation1] sm:$0xff pattern:$0x75316420]
    %v37 = vld.sshfl [vmem:[#allocation1 + $0x8] sm:$0xff pattern:$0x75316420]
    %s38 = scalar_lea.vmem [#allocation1], 16
    %39 = vst [vmem:[%s38] ss:$2 sm:$0xff] %v32
    %v40 = vld.sshfl [vmem:[#allocation1 + $0x10] sm:$0xff pattern:$0x75316420]
    %v41 = vld.sshfl [vmem:[#allocation1 + $0x18] sm:$0xff pattern:$0x75316420]
    %vm46 = vcmask 1043456
    %v47 = vsel %vm46, %v36, 0.0
    %v48 = vsel %vm46, %v40, 0.0
    %v49 = vadd.f32 %v47, %v48
    %v50 = vsel %vm46, %v37, 0.0
    %v51 = vsel %vm46, %v41, 0.0
    %v52 = vadd.f32 %v50, %v51
    %v53 = vsel %vm46, %v49, 0.0
    %v54 = vsel %vm46, %v52, 0.0
    %v55 = vadd.f32 %v53, %v54
    %56 = vadd.xlane.f32.xlu0 %v55
    %v57 = vpop.xlane.xlu0 %56
    %v58 = vmul.f32 %v57, 0.001953125
    %v61 = vunpack.c.l.s4 839922192
    %v62 = vunpack.c.0.s8 %v61
    %v63 = vperm.slane %v58, %v62
    %v65 = vsub.f32 %v31, %v63
    %v66 = vsub.f32 %v32, %v63
    %v67 = vmul.f32 %v65, %v65
    %v68 = vmul.f32 %v66, %v66
    %71 = vst [vmem:[#allocation1] ss:$2 sm:$0xff] %v67
    %v72 = vld.sshfl [vmem:[#allocation1] sm:$0xff pattern:$0x75316420]
    %v73 = vld.sshfl [vmem:[#allocation1 + $0x8] sm:$0xff pattern:$0x75316420]
    %s74 = scalar_lea.vmem [#allocation1], 16
    %75 = vst [vmem:[%s74] ss:$2 sm:$0xff] %v68
    %v76 = vld.sshfl [vmem:[#allocation1 + $0x10] sm:$0xff pattern:$0x75316420]
    %v77 = vld.sshfl [vmem:[#allocation1 + $0x18] sm:$0xff pattern:$0x75316420]
    %v82 = vsel %vm46, %v72, 0.0
    %v83 = vsel %vm46, %v76, 0.0
    %v84 = vadd.f32 %v82, %v83
    %v85 = vsel %vm46, %v73, 0.0
    %v86 = vsel %vm46, %v77, 0.0
    %v87 = vadd.f32 %v85, %v86
    %v88 = vsel %vm46, %v84, 0.0
    %v89 = vsel %vm46, %v87, 0.0
    %v90 = vadd.f32 %v88, %v89
    %91 = vadd.xlane.f32.xlu0 %v90
    %v92 = vpop.xlane.xlu0 %91
    %v93 = vmul.f32 %v92, 0.001953125
    %v94 = vld [vmem:[%s1] sm:$0xf]
    %v95 = vadd.f32 %v93, 1e-05
    %v96 = vrsqrt.pop %v95
    %v97 = vmul.f32 %v96, %v95
    %v98 = vmul.f32 %v97, %v96
    %v99 = vmul.f32 0.5, %v98
    %v100 = vsub.f32 1.5, %v99
    %v101 = vmul.f32 %v96, %v100
    %vm102 = vweird.f32 %v95
    %vm103 = vweird.f32 %v96
    %vm104 = vmor %vm102, %vm103
    %v105 = vsel %vm104, %v96, %v101
    %v106 = vmul.f32 %v94, %v105
    %108 = vset.pattern.permute.xlu0 0
    %109 = vperm.xlu0 %108, %v106
    %v110 = vpop.permute.xlu0 %109
    %v112 = vunpack.c.l.s4 839922192
    %v113 = vunpack.c.0.s8 %v112
    %v114 = vperm.slane %v110, %v113
    %v116 = vmul.f32 %v65, %v114
    %v117 = vmul.f32 %v66, %v114
    %v118 = vld [vmem:[%s2] sm:$0xf]
    %120 = vset.pattern.permute.xlu0 0
    %121 = vperm.xlu0 %120, %v118
    %v122 = vpop.permute.xlu0 %121
    %v124 = vunpack.c.l.s4 839922192
    %v125 = vunpack.c.0.s8 %v124
    %v126 = vperm.slane %v122, %v125
    %v128 = vadd.f32 %v116, %v126
    %v129 = vadd.f32 %v117, %v126
    %v130 = vmul.f32 %v128, 0.01
    %v131 = vmul.f32 %v129, 0.01
    %v132 = vmax.f32 %v128, %v130
    %v133 = vmax.f32 %v129, %v131
    %134 = vst [vmem:[#allocation5] sm:$0xff] %v132
    %135 = vst [vmem:[#allocation5 + $0x8] sm:$0xff] %v133
    // Predicated region
    $region18: #{tpu_custom_call.1} parent=1 // pred_check
      _
    $region19: #{tpu_custom_call.1} parent=1 // pred_check_branch
      %137 = sbr.rel (0) target = $region21
    $region20: #{tpu_custom_call.1} parent=1 // pred_region
      %139 = vsyncadd [#allocation4], 0
      %s140 = sshll.u32 [#allocation5], 4
      %s141 = int_to_ptr.vmem [resolvable:$true] %s140
      %s142 = sshll.u32 %s3, 4
      %s143 = int_to_ptr.hbm [resolvable:$true] %s142
      %148 = dma.vmem_to_hbm [thread:$0]  %s141, 256, %s143, [#allocation4], 128, 128, 8
    $region21: #{tpu_custom_call.1} parent=1 // pred_fallthru
      _
    // Predicated region
    $region22: #{tpu_custom_call.1} parent=1 // pred_check
      _
    $region23: #{tpu_custom_call.1} parent=1 // pred_check_branch
      %150 = sbr.rel (0) target = $region25
    $region24: #{tpu_custom_call.1} parent=1 // pred_region
      %152 = dma.done [#allocation4], 256
    $region25: #{tpu_custom_call.1} parent=1 // pred_fallthru
      _
    %153 = vsyncpa [#allocation3], 1
    %154 = vsyncpa [#allocation4], 1

</llo_original>
